<compile_context>
chip_gen: v6e
topology: v6e:2x2x1
jax: 0.10.0
libtpu: 0.0.40
codegen_flags: <defaults>
</compile_context>

<pallas_src>
import functools

import jax
import jax.numpy as jnp
from jax.experimental import pallas as pl
from jax.experimental.pallas import tpu as pltpu

HP = 128   # fused + zero-padded hidden width (>= 2*hidden_size), lane-dense
OUT = 128  # lane-dense packed output width   (>= 1 + n_actions)


def _actor_critic_kernel(x_ref, w1_ref, b1_ref, w2_ref, b2_ref, w3_ref, b3_ref,
                         out_ref, *, n_actions):
    x = x_ref[...]

    def elu(z):
        # nn.ELU(alpha=1.0): z if z > 0 else exp(z) - 1.
        # (exp(z)-1 kept over expm1 for guaranteed Mosaic lowering; ~1 ulp abs diff.)
        return jnp.where(z > 0, z, jnp.exp(z) - 1.0)

    # Layer 1: shared-input fused critic|actor columns -> one MXU pass.
    h = elu(jnp.dot(x, w1_ref[...], preferred_element_type=jnp.float32) + b1_ref[...])
    # Layer 2: block-diagonal fused weight (128 lane-dense) -> one MXU pass.
    h = elu(jnp.dot(h, w2_ref[...], preferred_element_type=jnp.float32) + b2_ref[...])
    # Layer 3: packed lane-dense head: [value | actor logits | zero pad].
    y = jnp.dot(h, w3_ref[...], preferred_element_type=jnp.float32) + b3_ref[...]

    col = jax.lax.broadcasted_iota(jnp.int32, y.shape, 1)
    is_logit = jnp.logical_and(col >= 1, col <= n_actions)

    # Masked softmax over the actor-logit lanes only.
    masked = jnp.where(is_logit, y, -1e30)
    m = jnp.max(masked, axis=-1, keepdims=True)
    e = jnp.exp(masked - m)                      # -1e30 lanes underflow to exactly 0
    denom = jnp.sum(e, axis=-1, keepdims=True)
    inv = pl.reciprocal(denom, approx=True)      # EUP slot
    inv = inv * (2.0 - denom * inv)              # one Newton step -> ~f32 exact
    probs = e * inv

    # Single lane-dense store: lane 0 = critic value, lanes 1..n_actions = probs.
    out_ref[...] = jnp.where(col == 0, y, probs).astype(out_ref.dtype)


def pack_params(params):
    """One-time fusion + zero-padding of the raw per-layer parameters.

    Called once at init (NOT per forward step) per perf feedback: the concat /
    scatter ops and their HBM round-trips would otherwise cost more per call
    than the kernel itself.
    """
    F, H = params["cw1"].shape
    n_actions = params["aw3"].shape[1]
    assert 2 * H <= HP and 1 + n_actions <= OUT

    w1 = (jnp.zeros((F, HP), jnp.float32)
          .at[:, :H].set(params["cw1"]).at[:, H:2 * H].set(params["aw1"]))
    b1 = (jnp.zeros((1, HP), jnp.float32)
          .at[:, :H].set(params["cb1"]).at[:, H:2 * H].set(params["ab1"]))
    w2 = (jnp.zeros((HP, HP), jnp.float32)
          .at[:H, :H].set(params["cw2"]).at[H:2 * H, H:2 * H].set(params["aw2"]))
    b2 = (jnp.zeros((1, HP), jnp.float32)
          .at[:, :H].set(params["cb2"]).at[:, H:2 * H].set(params["ab2"]))
    w3 = (jnp.zeros((HP, OUT), jnp.float32)
          .at[:H, 0:1].set(params["cw3"])
          .at[H:2 * H, 1:1 + n_actions].set(params["aw3"]))
    b3 = (jnp.zeros((1, OUT), jnp.float32)
          .at[:, 0:1].set(params["cb3"]).at[:, 1:1 + n_actions].set(params["ab3"]))

    fused = {"w1": w1, "b1": b1, "w2": w2, "b2": b2, "w3": w3, "b3": b3}
    return fused, n_actions


def _pick_batch_block(B):
    # Prefer big f32-sublane-aligned blocks (amortize ~0.35 us/grid-step), but
    # cap at B//2 when B >= 16 so the "parallel" batch axis has >= 2 steps and
    # can shard across v7x's 2 TensorCores.  Falls back to one full-array block
    # when B is not 8-aligned.
    cap = B if B < 16 else B // 2
    for bm in (1024, 512, 256, 128, 64, 32, 16, 8):
        if bm <= cap and B % bm == 0:
            return bm
    return B


def actor_critic_forward(x, fused, *, n_actions):
    """Fused actor+critic MLP forward pass in one Pallas kernel.

    Takes the pre-fused (packed) parameters and returns (probs, value).
    """
    B, F = x.shape
    bm = _pick_batch_block(B)
    grid = (B // bm,)
    const = lambda i: (0, 0)   # weights/biases stay VMEM-resident across grid steps

    # Advisory cost estimate so XLA schedules the surrounding graph around us.
    flops = 2 * B * (F * HP + HP * HP + HP * OUT)
    transcendentals = B * (2 * HP + OUT + 1)           # 2x ELU exp, softmax exp, recip
    bytes_accessed = 4 * (B * F                        # x
                          + F * HP + HP + HP * HP + HP + HP * OUT + OUT  # fused params
                          + B * OUT)                   # packed output slab
    cost = pl.CostEstimate(flops=flops, transcendentals=transcendentals,
                           bytes_accessed=bytes_accessed)

    out = pl.pallas_call(
        functools.partial(_actor_critic_kernel, n_actions=n_actions),
        out_shape=jax.ShapeDtypeStruct((B, OUT), jnp.float32),
        grid=grid,
        in_specs=[
            pl.BlockSpec((bm, F), lambda i: (i, 0)),
            pl.BlockSpec(fused["w1"].shape, const),
            pl.BlockSpec(fused["b1"].shape, const),
            pl.BlockSpec(fused["w2"].shape, const),
            pl.BlockSpec(fused["b2"].shape, const),
            pl.BlockSpec(fused["w3"].shape, const),
            pl.BlockSpec(fused["b3"].shape, const),
        ],
        out_specs=pl.BlockSpec((bm, OUT), lambda i: (i, 0)),
        compiler_params=pltpu.CompilerParams(
            dimension_semantics=("parallel",)),   # shards batch grid across v7x's 2 TCs
        cost_estimate=cost,
    )(x, fused["w1"], fused["b1"], fused["w2"], fused["b2"],
      fused["w3"], fused["b3"])

    value = out[:, 0:1]
    probs = out[:, 1:1 + n_actions]
    return probs, value


def init_params(key, inputs_features, n_actions, hidden_size):
    """Deterministic synthetic parameters (shapes match nn.Linear in the module)."""
    keys = jax.random.split(key, 12)

    def lin(kw, kb, fan_in, fan_out):
        bound = 1.0 / jnp.sqrt(jnp.float32(fan_in))
        # stored as (in, out) so kernel does x @ W; PyTorch stores (out, in).
        w = jax.random.uniform(kw, (fan_in, fan_out), jnp.float32, -bound, bound)
        b = jax.random.uniform(kb, (1, fan_out), jnp.float32, -bound, bound)
        return w, b

    p = {}
    p["cw1"], p["cb1"] = lin(keys[0], keys[1], inputs_features, hidden_size)
    p["cw2"], p["cb2"] = lin(keys[2], keys[3], hidden_size, hidden_size)
    p["cw3"], p["cb3"] = lin(keys[4], keys[5], hidden_size, 1)
    p["aw1"], p["ab1"] = lin(keys[6], keys[7], inputs_features, hidden_size)
    p["aw2"], p["ab2"] = lin(keys[8], keys[9], hidden_size, hidden_size)
    p["aw3"], p["ab3"] = lin(keys[10], keys[11], hidden_size, n_actions)
    return p


if __name__ == "__main__":
    # CartPole-v1: 4 observation features, 2 actions; small hidden size & batch.
    # NOTE: at B=8 the call is launch/fixed-latency bound; an RL loop should
    # batch multiple environments into one call rather than tune the kernel.
    inputs_features, n_actions, hidden_size, batch = 4, 2, 32, 8

    key = jax.random.PRNGKey(0)
    k_params, k_x = jax.random.split(key)
    params = init_params(k_params, inputs_features, n_actions, hidden_size)
    x = jax.random.normal(k_x, (batch, inputs_features), jnp.float32)

    # One-time parameter fusion/padding (hoisted out of the per-step forward).
    fused, n_act = pack_params(params)
    fused = jax.tree_util.tree_map(jax.block_until_ready, fused)

    forward = jax.jit(functools.partial(actor_critic_forward, n_actions=n_act))
    probs, value = forward(x, fused)
    jax.block_until_ready((probs, value))

    # TODO(synk): torch.distributions.Categorical has no Pallas equivalent;
    # the kernel returns its parameterization (probs) plus the critic value.

    # Sanity checks against a pure-JAX reference of the original module.
    def elu(z):
        return jnp.where(z > 0, z, jnp.exp(z) - 1.0)

    h = elu(x @ params["cw1"] + params["cb1"])
    h = elu(h @ params["cw2"] + params["cb2"])
    value_ref = h @ params["cw3"] + params["cb3"]
    a = elu(x @ params["aw1"] + params["ab1"])
    a = elu(a @ params["aw2"] + params["ab2"])
    probs_ref = jax.nn.softmax(a @ params["aw3"] + params["ab3"], axis=-1)

    assert probs.shape == (batch, n_actions) and value.shape == (batch, 1)
    assert jnp.allclose(value, value_ref, atol=1e-5)
    assert jnp.allclose(probs, probs_ref, atol=1e-5)
    assert jnp.allclose(jnp.sum(probs, axis=-1), 1.0, atol=1e-5)

    print("KERNEL_OK")
</pallas_src>

<mosaic_0001>
module attributes {stable_mosaic.version = 11 : i64} {
  func.func @_actor_critic_kernel(%arg0: i32, %arg1: memref<8x4xf32, #tpu.memory_space<vmem>>, %arg2: memref<4x128xf32, #tpu.memory_space<vmem>>, %arg3: memref<1x128xf32, #tpu.memory_space<vmem>>, %arg4: memref<128x128xf32, #tpu.memory_space<vmem>>, %arg5: memref<1x128xf32, #tpu.memory_space<vmem>>, %arg6: memref<128x128xf32, #tpu.memory_space<vmem>>, %arg7: memref<1x128xf32, #tpu.memory_space<vmem>>, %arg8: memref<8x128xf32, #tpu.memory_space<vmem>>) attributes {dimension_semantics = [#tpu.dimension_semantics<parallel>], iteration_bounds = array<i64: 1>, scalar_prefetch = 0 : i64, scratch_operands = 0 : i64, tpu.core_type = #tpu.core_type<tc>, window_params = [{transform_indices = @transform_0, window_bounds = array<i64: 8, 4>}, {pipeline_mode = #tpu.pipeline_mode<synchronous>, transform_indices = @transform_1, window_bounds = array<i64: 4, 128>}, {pipeline_mode = #tpu.pipeline_mode<synchronous>, transform_indices = @transform_2, window_bounds = array<i64: 1, 128>}, {pipeline_mode = #tpu.pipeline_mode<synchronous>, transform_indices = @transform_3, window_bounds = array<i64: 128, 128>}, {pipeline_mode = #tpu.pipeline_mode<synchronous>, transform_indices = @transform_4, window_bounds = array<i64: 1, 128>}, {pipeline_mode = #tpu.pipeline_mode<synchronous>, transform_indices = @transform_5, window_bounds = array<i64: 128, 128>}, {pipeline_mode = #tpu.pipeline_mode<synchronous>, transform_indices = @transform_6, window_bounds = array<i64: 1, 128>}, {transform_indices = @transform_7, window_bounds = array<i64: 8, 128>}]} {
    %c0 = arith.constant 0 : index
    %c0_0 = arith.constant 0 : index
    %0 = vector.load %arg1[%c0, %c0_0] : memref<8x4xf32, #tpu.memory_space<vmem>>, vector<8x4xf32>
    %c0_1 = arith.constant 0 : index
    %c0_2 = arith.constant 0 : index
    %1 = vector.load %arg2[%c0_1, %c0_2] : memref<4x128xf32, #tpu.memory_space<vmem>>, vector<4x128xf32>
    %cst = arith.constant dense<0.000000e+00> : vector<8x128xf32>
    %2 = tpu.matmul %0, %1, %cst {dimension_numbers = #tpu.dot_dimension_numbers<[1], [0], [0], [1], [0, 0, 1, 1], [], []>} : vector<8x4xf32>, vector<4x128xf32>, vector<8x128xf32> -> vector<8x128xf32>
    %c0_3 = arith.constant 0 : index
    %c0_4 = arith.constant 0 : index
    %3 = vector.load %arg3[%c0_3, %c0_4] : memref<1x128xf32, #tpu.memory_space<vmem>>, vector<1x128xf32>
    %4 = vector.broadcast %3 : vector<1x128xf32> to vector<8x128xf32>
    %5 = arith.addf %2, %4 : vector<8x128xf32>
    %cst_5 = arith.constant 0.000000e+00 : f32
    %6 = vector.broadcast %cst_5 : f32 to vector<8x128xf32>
    %7 = arith.cmpf ogt, %5, %6 : vector<8x128xf32>
    %8 = math.exp %5 : vector<8x128xf32>
    %cst_6 = arith.constant 1.000000e+00 : f32
    %9 = vector.broadcast %cst_6 : f32 to vector<8x128xf32>
    %10 = arith.subf %8, %9 : vector<8x128xf32>
    %11 = arith.select %7, %5, %10 : vector<8x128xi1>, vector<8x128xf32>
    %c0_7 = arith.constant 0 : index
    %c0_8 = arith.constant 0 : index
    %12 = vector.load %arg4[%c0_7, %c0_8] : memref<128x128xf32, #tpu.memory_space<vmem>>, vector<128x128xf32>
    %cst_9 = arith.constant dense<0.000000e+00> : vector<8x128xf32>
    %13 = tpu.matmul %11, %12, %cst_9 {dimension_numbers = #tpu.dot_dimension_numbers<[1], [0], [0], [1], [0, 0, 1, 1], [], []>} : vector<8x128xf32>, vector<128x128xf32>, vector<8x128xf32> -> vector<8x128xf32>
    %c0_10 = arith.constant 0 : index
    %c0_11 = arith.constant 0 : index
    %14 = vector.load %arg5[%c0_10, %c0_11] : memref<1x128xf32, #tpu.memory_space<vmem>>, vector<1x128xf32>
    %15 = vector.broadcast %14 : vector<1x128xf32> to vector<8x128xf32>
    %16 = arith.addf %13, %15 : vector<8x128xf32>
    %cst_12 = arith.constant 0.000000e+00 : f32
    %17 = vector.broadcast %cst_12 : f32 to vector<8x128xf32>
    %18 = arith.cmpf ogt, %16, %17 : vector<8x128xf32>
    %19 = math.exp %16 : vector<8x128xf32>
    %cst_13 = arith.constant 1.000000e+00 : f32
    %20 = vector.broadcast %cst_13 : f32 to vector<8x128xf32>
    %21 = arith.subf %19, %20 : vector<8x128xf32>
    %22 = arith.select %18, %16, %21 : vector<8x128xi1>, vector<8x128xf32>
    %c0_14 = arith.constant 0 : index
    %c0_15 = arith.constant 0 : index
    %23 = vector.load %arg6[%c0_14, %c0_15] : memref<128x128xf32, #tpu.memory_space<vmem>>, vector<128x128xf32>
    %cst_16 = arith.constant dense<0.000000e+00> : vector<8x128xf32>
    %24 = tpu.matmul %22, %23, %cst_16 {dimension_numbers = #tpu.dot_dimension_numbers<[1], [0], [0], [1], [0, 0, 1, 1], [], []>} : vector<8x128xf32>, vector<128x128xf32>, vector<8x128xf32> -> vector<8x128xf32>
    %c0_17 = arith.constant 0 : index
    %c0_18 = arith.constant 0 : index
    %25 = vector.load %arg7[%c0_17, %c0_18] : memref<1x128xf32, #tpu.memory_space<vmem>>, vector<1x128xf32>
    %26 = vector.broadcast %25 : vector<1x128xf32> to vector<8x128xf32>
    %27 = arith.addf %24, %26 : vector<8x128xf32>
    %28 = tpu.iota {dimensions = array<i32: 1>} : vector<8x128xi32>
    %c1_i32 = arith.constant 1 : i32
    %29 = vector.broadcast %c1_i32 : i32 to vector<8x128xi32>
    %30 = arith.cmpi sge, %28, %29 : vector<8x128xi32>
    %c2_i32 = arith.constant 2 : i32
    %31 = vector.broadcast %c2_i32 : i32 to vector<8x128xi32>
    %32 = arith.cmpi sle, %28, %31 : vector<8x128xi32>
    %33 = arith.andi %30, %32 : vector<8x128xi1>
    %cst_19 = arith.constant -1.000000e+30 : f32
    %34 = vector.broadcast %cst_19 : f32 to vector<8x128xf32>
    %35 = arith.select %33, %27, %34 : vector<8x128xi1>, vector<8x128xf32>
    %cst_20 = arith.constant dense<0xFF800000> : vector<8xf32>
    %36 = vector.multi_reduction <maximumf>, %35, %cst_20 [1] : vector<8x128xf32> to vector<8xf32>
    %37 = vector.shape_cast %36 : vector<8xf32> to vector<8x1xf32>
    %38 = vector.broadcast %37 : vector<8x1xf32> to vector<8x128xf32>
    %39 = arith.subf %35, %38 : vector<8x128xf32>
    %40 = math.exp %39 : vector<8x128xf32>
    %cst_21 = arith.constant dense<0.000000e+00> : vector<8xf32>
    %41 = vector.multi_reduction <add>, %40, %cst_21 [1] : vector<8x128xf32> to vector<8xf32>
    %42 = vector.shape_cast %41 : vector<8xf32> to vector<8x1xf32>
    %43 = tpu.reciprocal %42 {approx = true} : vector<8x1xf32> -> vector<8x1xf32>
    %44 = arith.mulf %42, %43 : vector<8x1xf32>
    %cst_22 = arith.constant 2.000000e+00 : f32
    %45 = vector.broadcast %cst_22 : f32 to vector<8x1xf32>
    %46 = arith.subf %45, %44 : vector<8x1xf32>
    %47 = arith.mulf %43, %46 : vector<8x1xf32>
    %48 = vector.broadcast %47 : vector<8x1xf32> to vector<8x128xf32>
    %49 = arith.mulf %40, %48 : vector<8x128xf32>
    %c0_i32 = arith.constant 0 : i32
    %50 = vector.broadcast %c0_i32 : i32 to vector<8x128xi32>
    %51 = arith.cmpi eq, %28, %50 : vector<8x128xi32>
    %52 = arith.select %51, %27, %49 : vector<8x128xi1>, vector<8x128xf32>
    %c0_23 = arith.constant 0 : index
    %c0_24 = arith.constant 0 : index
    %53 = vector.load %arg8[%c0_23, %c0_24] : memref<8x128xf32, #tpu.memory_space<vmem>>, vector<8x128xf32>
    tpu.vector_store %arg8[%c0_23, %c0_24], %52 {strides = array<i32>} : memref<8x128xf32, #tpu.memory_space<vmem>>, vector<8x128xf32>,
    return
  }
  func.func @transform_0(%arg0: i32) -> (i32, i32) {
    %c0_i32 = arith.constant 0 : i32
    %c0_i32_0 = arith.constant 0 : i32
    return %arg0, %c0_i32 : i32, i32
  }
  func.func @transform_1(%arg0: i32) -> (i32, i32) {
    %c0_i32 = arith.constant 0 : i32
    %c0_i32_0 = arith.constant 0 : i32
    %c0_i32_1 = arith.constant 0 : i32
    return %c0_i32, %c0_i32_0 : i32, i32
  }
  func.func @transform_2(%arg0: i32) -> (i32, i32) {
    %c0_i32 = arith.constant 0 : i32
    %c0_i32_0 = arith.constant 0 : i32
    %c0_i32_1 = arith.constant 0 : i32
    return %c0_i32, %c0_i32_0 : i32, i32
  }
  func.func @transform_3(%arg0: i32) -> (i32, i32) {
    %c0_i32 = arith.constant 0 : i32
    %c0_i32_0 = arith.constant 0 : i32
    %c0_i32_1 = arith.constant 0 : i32
    return %c0_i32, %c0_i32_0 : i32, i32
  }
  func.func @transform_4(%arg0: i32) -> (i32, i32) {
    %c0_i32 = arith.constant 0 : i32
    %c0_i32_0 = arith.constant 0 : i32
    %c0_i32_1 = arith.constant 0 : i32
    return %c0_i32, %c0_i32_0 : i32, i32
  }
  func.func @transform_5(%arg0: i32) -> (i32, i32) {
    %c0_i32 = arith.constant 0 : i32
    %c0_i32_0 = arith.constant 0 : i32
    %c0_i32_1 = arith.constant 0 : i32
    return %c0_i32, %c0_i32_0 : i32, i32
  }
  func.func @transform_6(%arg0: i32) -> (i32, i32) {
    %c0_i32 = arith.constant 0 : i32
    %c0_i32_0 = arith.constant 0 : i32
    %c0_i32_1 = arith.constant 0 : i32
    return %c0_i32, %c0_i32_0 : i32, i32
  }
  func.func @transform_7(%arg0: i32) -> (i32, i32) {
    %c0_i32 = arith.constant 0 : i32
    %c0_i32_0 = arith.constant 0 : i32
    return %arg0, %c0_i32 : i32, i32
  }
}

</mosaic_0001>

<llo_original>
// kernel: actor_critic_forward.1
$region0: #{actor_critic_forward.1}
  #allocation0 [shape = 'u32[]', space=smem, size = 0x4, offset = 0x4, fixed_abs, tag = 'smem constant byte address 0x4 - core index']
  #allocation1 [shape = 'u32[144,128]{1,0:T(1,128)}', space=vmem, size = 0x12000, scoped, tag = 'internal scratch']
  %s0 = inlined_call_operand.vmem [shape: f32[8,4], index: 0, kind: input, shape index: {}]
  %s1 = inlined_call_operand.vmem [shape: f32[4,128], index: 1, kind: input, shape index: {}]
  %s2 = inlined_call_operand.vmem [shape: f32[1,128], index: 2, kind: input, shape index: {}]
  %s3 = inlined_call_operand.hbm [shape: f32[128,128], index: 3, kind: input, shape index: {}]
  %s4 = inlined_call_operand.vmem [shape: f32[1,128], index: 4, kind: input, shape index: {}]
  %s5 = inlined_call_operand.hbm [shape: f32[128,128], index: 5, kind: input, shape index: {}]
  %s6 = inlined_call_operand.vmem [shape: f32[1,128], index: 6, kind: input, shape index: {}]
  %s7 = inlined_call_operand.vmem [shape: f32[8,128], index: 7, kind: output, shape index: {}]
  %s8 = sld [smem:[#allocation0]]
  $region46: #{actor_critic_forward.1} parent=0
    _
  %s10 = ssub.s32 1, %s8
  %s11 = scalar_select 0, %s10, %s8
  $region1: #{actor_critic_forward.1} parent=0
    #allocation2 [shape = 'u8[65536]{0}', space=vmem, size = 0x10000, scoped, tag = 'input window, operand 3, single buffered']
    #allocation3 [shape = 's32[1]{0}', space=sflag, size = 0x4, scoped, tag = 'scoped memory for actor_critic_forward.1']
    #allocation4 [shape = 'u8[65536]{0}', space=vmem, size = 0x10000, scoped, tag = 'input window, operand 5, single buffered']
    #allocation5 [shape = 's32[1]{0}', space=sflag, size = 0x4, scoped, tag = 'scoped memory for actor_critic_forward.1']
    %12 = vsyncpa [#allocation3], 0
    %13 = vsyncpa [#allocation5], 0
    // Predicated region
    $region2: #{actor_critic_forward.1} parent=1 // pred_check
      _
    $region3: #{actor_critic_forward.1} parent=1 // pred_check_branch
      %15 = sbr.rel (0) target = $region5
    $region4: #{actor_critic_forward.1} parent=1 // pred_region
      _
    $region5: #{actor_critic_forward.1} parent=1 // pred_fallthru
      _
    // Predicated region
    $region6: #{actor_critic_forward.1} parent=1 // pred_check
      _
    $region7: #{actor_critic_forward.1} parent=1 // pred_check_branch
      %17 = sbr.rel (0) target = $region9
    $region8: #{actor_critic_forward.1} parent=1 // pred_region
      _
    $region9: #{actor_critic_forward.1} parent=1 // pred_fallthru
      _
    // Predicated region
    $region10: #{actor_critic_forward.1} parent=1 // pred_check
      _
    $region11: #{actor_critic_forward.1} parent=1 // pred_check_branch
      %19 = sbr.rel (0) target = $region13
    $region12: #{actor_critic_forward.1} parent=1 // pred_region
      _
    $region13: #{actor_critic_forward.1} parent=1 // pred_fallthru
      _
    // Predicated region
    $region14: #{actor_critic_forward.1} parent=1 // pred_check
      _
    $region15: #{actor_critic_forward.1} parent=1 // pred_check_branch
      %21 = sbr.rel (0) target = $region17
    $region16: #{actor_critic_forward.1} parent=1 // pred_region
      %s23 = ssub.s32 2048, 2048
      %24 = vsyncadd [#allocation3], %s23
      %s25 = sshll.u32 [#allocation2], 4
      %s26 = int_to_ptr.vmem [resolvable:$true] %s25
      %31 = dma.hbm_to_vmem [thread:$0]  %s3, 2048, %s26, [#allocation3], 128, 128, 8
    $region17: #{actor_critic_forward.1} parent=1 // pred_fallthru
      _
    // Predicated region
    $region18: #{actor_critic_forward.1} parent=1 // pred_check
      _
    $region19: #{actor_critic_forward.1} parent=1 // pred_check_branch
      %33 = sbr.rel (0) target = $region21
    $region20: #{actor_critic_forward.1} parent=1 // pred_region
      _
    $region21: #{actor_critic_forward.1} parent=1 // pred_fallthru
      _
    // Predicated region
    $region22: #{actor_critic_forward.1} parent=1 // pred_check
      _
    $region23: #{actor_critic_forward.1} parent=1 // pred_check_branch
      %35 = sbr.rel (0) target = $region25
    $region24: #{actor_critic_forward.1} parent=1 // pred_region
      %s37 = ssub.s32 2048, 2048
      %38 = vsyncadd [#allocation5], %s37
      %s39 = sshll.u32 [#allocation4], 4
      %s40 = int_to_ptr.vmem [resolvable:$true] %s39
      %45 = dma.hbm_to_vmem [thread:$0]  %s5, 2048, %s40, [#allocation5], 128, 128, 8
    $region25: #{actor_critic_forward.1} parent=1 // pred_fallthru
      _
    // Predicated region
    $region26: #{actor_critic_forward.1} parent=1 // pred_check
      _
    $region27: #{actor_critic_forward.1} parent=1 // pred_check_branch
      %47 = sbr.rel (0) target = $region29
    $region28: #{actor_critic_forward.1} parent=1 // pred_region
      _
    $region29: #{actor_critic_forward.1} parent=1 // pred_fallthru
      _
    // Predicated region
    $region30: #{actor_critic_forward.1} parent=1 // pred_check
      _
    $region31: #{actor_critic_forward.1} parent=1 // pred_check_branch
      %49 = sbr.rel (0) target = $region33
    $region32: #{actor_critic_forward.1} parent=1 // pred_region
      %50 = dma.done [#allocation3], 2048
    $region33: #{actor_critic_forward.1} parent=1 // pred_fallthru
      _
    // Predicated region
    $region34: #{actor_critic_forward.1} parent=1 // pred_check
      _
    $region35: #{actor_critic_forward.1} parent=1 // pred_check_branch
      %52 = sbr.rel (0) target = $region37
    $region36: #{actor_critic_forward.1} parent=1 // pred_region
      %53 = dma.done [#allocation5], 2048
    $region37: #{actor_critic_forward.1} parent=1 // pred_fallthru
      _
    %v54 = vld [vmem:[%s0] sm:$0xff]
    %v55 = vld [vmem:[%s1] sm:$0xf]
    %v56 = vld [vmem:[%s2] sm:$0x1]
    %v58 = vlaneseq
    %v59 = vshrl.u32 %v58, 7
    %v60 = vsub.s32 0, %v59
    %v61 = vrot.slane %v56, %v60
    %vm63 = vcmask 31744
    %v65 = vsel %vm63, %v54, 0
    %vm67 = vcmask 1043456
    %v69 = vsel %vm67, %v55, 0
    %71 = vmatprep.subr.mxu0 0.0
    %72 = vmatpush1.msra.mxu0 0.0
    %73 = vmatprep.subr.mxu0 0.0
    %74 = vmatpush1.msra.mxu0 0.0
    %75 = vmatprep.subr.mxu0 0.0
    %76 = vmatpush1.msra.mxu0 0.0
    %77 = vmatprep.subr.mxu0 0.0
    %78 = vmatpush1.msra.mxu0 0.0
    %79 = vmatprep.subr.mxu0 0.0
    %80 = vmatpush1.msra.mxu0 0.0
    %81 = vmatprep.subr.mxu0 0.0
    %82 = vmatpush1.msra.mxu0 0.0
    %83 = vmatprep.subr.mxu0 0.0
    %84 = vmatpush1.msra.mxu0 0.0
    %85 = vmatprep.subr.mxu0 0.0
    %86 = vmatpush1.msra.mxu0 0.0
    %87 = vmatprep.subr.mxu0 0.0
    %88 = vmatpush1.msra.mxu0 0.0
    %89 = vmatprep.subr.mxu0 0.0
    %90 = vmatpush1.msra.mxu0 0.0
    %91 = vmatprep.subr.mxu0 0.0
    %92 = vmatpush1.msra.mxu0 0.0
    %93 = vmatprep.subr.mxu0 0.0
    %94 = vmatpush1.msra.mxu0 0.0
    %95 = vmatprep.subr.mxu0 0.0
    %96 = vmatpush1.msra.mxu0 0.0
    %97 = vmatprep.subr.mxu0 0.0
    %98 = vmatpush1.msra.mxu0 0.0
    %99 = vmatprep.subr.mxu0 0.0
    %100 = vmatpush1.msra.mxu0 0.0
    %101 = vmatprep.subr.mxu0 0.0
    %102 = vmatpush1.msra.mxu0 %v69
    %103 = vmatprep.subr.mxu0 0.0
    %104 = vmatpush2.msra.mxu0 0.0
    %105 = vmatprep.subr.mxu0 0.0
    %106 = vmatpush2.msra.mxu0 0.0
    %107 = vmatprep.subr.mxu0 0.0
    %108 = vmatpush2.msra.mxu0 0.0
    %109 = vmatprep.subr.mxu0 0.0
    %110 = vmatpush2.msra.mxu0 0.0
    %111 = vmatprep.subr.mxu0 0.0
    %112 = vmatpush2.msra.mxu0 0.0
    %113 = vmatprep.subr.mxu0 0.0
    %114 = vmatpush2.msra.mxu0 0.0
    %115 = vmatprep.subr.mxu0 0.0
    %116 = vmatpush2.msra.mxu0 0.0
    %117 = vmatprep.subr.mxu0 0.0
    %118 = vmatpush2.msra.mxu0 0.0
    %119 = vmatprep.subr.mxu0 0.0
    %120 = vmatpush2.msra.mxu0 0.0
    %121 = vmatprep.subr.mxu0 0.0
    %122 = vmatpush2.msra.mxu0 0.0
    %123 = vmatprep.subr.mxu0 0.0
    %124 = vmatpush2.msra.mxu0 0.0
    %125 = vmatprep.subr.mxu0 0.0
    %126 = vmatpush2.msra.mxu0 0.0
    %127 = vmatprep.subr.mxu0 0.0
    %128 = vmatpush2.msra.mxu0 0.0
    %129 = vmatprep.subr.mxu0 0.0
    %130 = vmatpush2.msra.mxu0 0.0
    %131 = vmatprep.subr.mxu0 0.0
    %132 = vmatpush2.msra.mxu0 0.0
    %133 = vmatprep.subr.mxu0 0.0
    %134 = vmatpush2.msra.mxu0 0.0
    %135 = vmatprep.mubr.f32.mxu0 0.0
    %136 = vmatmul.mubr.f32.gmra.mxu0 %v65
    %v137 = vpop.f32.mrf.mxu0
    %v138 = vadd.f32 %v61, %v137
    %v139 = vpop.f32.mrf.mxu0
    %140 = vdwg.mxu0
    %vm141 = vcmp.gt.f32.partialorder %v138, 0.0
    %v142 = vmul.f32 %v138, 1.442695
    %v143 = vpow.pop %v142
    %v144 = vsub.f32 %v143, 1.0
    %v145 = vsel %vm141, %v138, %v144
    %v146 = vld [vmem:[#allocation2] sm:$0xff]
    %v147 = vld [vmem:[#allocation2 + $0x8] sm:$0xff]
    %v148 = vld [vmem:[#allocation2 + $0x10] sm:$0xff]
    %v149 = vld [vmem:[#allocation2 + $0x18] sm:$0xff]
    %v150 = vld [vmem:[#allocation2 + $0x20] sm:$0xff]
    %v151 = vld [vmem:[#allocation2 + $0x28] sm:$0xff]
    %v152 = vld [vmem:[#allocation2 + $0x30] sm:$0xff]
    %v153 = vld [vmem:[#allocation2 + $0x38] sm:$0xff]
    %v154 = vld [vmem:[#allocation2 + $0x40] sm:$0xff]
    %v155 = vld [vmem:[#allocation2 + $0x48] sm:$0xff]
    %v156 = vld [vmem:[#allocation2 + $0x50] sm:$0xff]
    %v157 = vld [vmem:[#allocation2 + $0x58] sm:$0xff]
    %v158 = vld [vmem:[#allocation2 + $0x60] sm:$0xff]
    %v159 = vld [vmem:[#allocation2 + $0x68] sm:$0xff]
    %v160 = vld [vmem:[#allocation2 + $0x70] sm:$0xff]
    %v161 = vld [vmem:[#allocation2 + $0x78] sm:$0xff]
    %v162 = vld [vmem:[%s4] sm:$0x1]
    %v164 = vlaneseq
    %v165 = vshrl.u32 %v164, 7
    %v166 = vsub.s32 0, %v165
    %v167 = vrot.slane %v162, %v166
    %169 = vmatprep.subr.mxu0 0.0
    %170 = vmatpush1.msra.mxu0 %v161
    %171 = vmatprep.subr.mxu0 0.0
    %172 = vmatpush1.msra.mxu0 %v160
    %173 = vmatprep.subr.mxu0 0.0
    %174 = vmatpush1.msra.mxu0 %v159
    %175 = vmatprep.subr.mxu0 0.0
    %176 = vmatpush1.msra.mxu0 %v158
    %177 = vmatprep.subr.mxu0 0.0
    %178 = vmatpush1.msra.mxu0 %v157
    %179 = vmatprep.subr.mxu0 0.0
    %180 = vmatpush1.msra.mxu0 %v156
    %181 = vmatprep.subr.mxu0 0.0
    %182 = vmatpush1.msra.mxu0 %v155
    %183 = vmatprep.subr.mxu0 0.0
    %184 = vmatpush1.msra.mxu0 %v154
    %185 = vmatprep.subr.mxu0 0.0
    %186 = vmatpush1.msra.mxu0 %v153
    %187 = vmatprep.subr.mxu0 0.0
    %188 = vmatpush1.msra.mxu0 %v152
    %189 = vmatprep.subr.mxu0 0.0
    %190 = vmatpush1.msra.mxu0 %v151
    %191 = vmatprep.subr.mxu0 0.0
    %192 = vmatpush1.msra.mxu0 %v150
    %193 = vmatprep.subr.mxu0 0.0
    %194 = vmatpush1.msra.mxu0 %v149
    %195 = vmatprep.subr.mxu0 0.0
    %196 = vmatpush1.msra.mxu0 %v148
    %197 = vmatprep.subr.mxu0 0.0
    %198 = vmatpush1.msra.mxu0 %v147
    %199 = vmatprep.subr.mxu0 0.0
    %200 = vmatpush1.msra.mxu0 %v146
    %201 = vmatprep.subr.mxu0 0.0
    %202 = vmatpush2.msra.mxu0 0.0
    %203 = vmatprep.subr.mxu0 0.0
    %204 = vmatpush2.msra.mxu0 0.0
    %205 = vmatprep.subr.mxu0 0.0
    %206 = vmatpush2.msra.mxu0 0.0
    %207 = vmatprep.subr.mxu0 0.0
    %208 = vmatpush2.msra.mxu0 0.0
    %209 = vmatprep.subr.mxu0 0.0
    %210 = vmatpush2.msra.mxu0 0.0
    %211 = vmatprep.subr.mxu0 0.0
    %212 = vmatpush2.msra.mxu0 0.0
    %213 = vmatprep.subr.mxu0 0.0
    %214 = vmatpush2.msra.mxu0 0.0
    %215 = vmatprep.subr.mxu0 0.0
    %216 = vmatpush2.msra.mxu0 0.0
    %217 = vmatprep.subr.mxu0 0.0
    %218 = vmatpush2.msra.mxu0 0.0
    %219 = vmatprep.subr.mxu0 0.0
    %220 = vmatpush2.msra.mxu0 0.0
    %221 = vmatprep.subr.mxu0 0.0
    %222 = vmatpush2.msra.mxu0 0.0
    %223 = vmatprep.subr.mxu0 0.0
    %224 = vmatpush2.msra.mxu0 0.0
    %225 = vmatprep.subr.mxu0 0.0
    %226 = vmatpush2.msra.mxu0 0.0
    %227 = vmatprep.subr.mxu0 0.0
    %228 = vmatpush2.msra.mxu0 0.0
    %229 = vmatprep.subr.mxu0 0.0
    %230 = vmatpush2.msra.mxu0 0.0
    %231 = vmatprep.subr.mxu0 0.0
    %232 = vmatpush2.msra.mxu0 0.0
    %233 = vmatprep.mubr.f32.mxu0 0.0
    %234 = vmatmul.mubr.f32.gmra.mxu0 %v145
    %v235 = vpop.f32.mrf.mxu0
    %v236 = vadd.f32 %v167, %v235
    %v237 = vpop.f32.mrf.mxu0
    %238 = vdwg.mxu0
    %vm239 = vcmp.gt.f32.partialorder %v236, 0.0
    %v240 = vmul.f32 %v236, 1.442695
    %v241 = vpow.pop %v240
    %v242 = vsub.f32 %v241, 1.0
    %v243 = vsel %vm239, %v236, %v242
    %v244 = vld [vmem:[#allocation4] sm:$0xff]
    %v245 = vld [vmem:[#allocation4 + $0x8] sm:$0xff]
    %v246 = vld [vmem:[#allocation4 + $0x10] sm:$0xff]
    %v247 = vld [vmem:[#allocation4 + $0x18] sm:$0xff]
    %v248 = vld [vmem:[#allocation4 + $0x20] sm:$0xff]
    %v249 = vld [vmem:[#allocation4 + $0x28] sm:$0xff]
    %v250 = vld [vmem:[#allocation4 + $0x30] sm:$0xff]
    %v251 = vld [vmem:[#allocation4 + $0x38] sm:$0xff]
    %v252 = vld [vmem:[#allocation4 + $0x40] sm:$0xff]
    %v253 = vld [vmem:[#allocation4 + $0x48] sm:$0xff]
    %v254 = vld [vmem:[#allocation4 + $0x50] sm:$0xff]
    %v255 = vld [vmem:[#allocation4 + $0x58] sm:$0xff]
    %v256 = vld [vmem:[#allocation4 + $0x60] sm:$0xff]
    %v257 = vld [vmem:[#allocation4 + $0x68] sm:$0xff]
    %v258 = vld [vmem:[#allocation4 + $0x70] sm:$0xff]
    %v259 = vld [vmem:[#allocation4 + $0x78] sm:$0xff]
    %v260 = vld [vmem:[%s6] sm:$0x1]
    %v262 = vlaneseq
    %v263 = vshrl.u32 %v262, 7
    %v264 = vsub.s32 0, %v263
    %v265 = vrot.slane %v260, %v264
    %267 = vmatprep.subr.mxu0 0.0
    %268 = vmatpush1.msra.mxu0 %v259
    %269 = vmatprep.subr.mxu0 0.0
    %270 = vmatpush1.msra.mxu0 %v258
    %271 = vmatprep.subr.mxu0 0.0
    %272 = vmatpush1.msra.mxu0 %v257
    %273 = vmatprep.subr.mxu0 0.0
    %274 = vmatpush1.msra.mxu0 %v256
    %275 = vmatprep.subr.mxu0 0.0
    %276 = vmatpush1.msra.mxu0 %v255
    %277 = vmatprep.subr.mxu0 0.0
    %278 = vmatpush1.msra.mxu0 %v254
    %279 = vmatprep.subr.mxu0 0.0
    %280 = vmatpush1.msra.mxu0 %v253
    %281 = vmatprep.subr.mxu0 0.0
    %282 = vmatpush1.msra.mxu0 %v252
    %283 = vmatprep.subr.mxu0 0.0
    %284 = vmatpush1.msra.mxu0 %v251
    %285 = vmatprep.subr.mxu0 0.0
    %286 = vmatpush1.msra.mxu0 %v250
    %287 = vmatprep.subr.mxu0 0.0
    %288 = vmatpush1.msra.mxu0 %v249
    %289 = vmatprep.subr.mxu0 0.0
    %290 = vmatpush1.msra.mxu0 %v248
    %291 = vmatprep.subr.mxu0 0.0
    %292 = vmatpush1.msra.mxu0 %v247
    %293 = vmatprep.subr.mxu0 0.0
    %294 = vmatpush1.msra.mxu0 %v246
    %295 = vmatprep.subr.mxu0 0.0
    %296 = vmatpush1.msra.mxu0 %v245
    %297 = vmatprep.subr.mxu0 0.0
    %298 = vmatpush1.msra.mxu0 %v244
    %299 = vmatprep.subr.mxu0 0.0
    %300 = vmatpush2.msra.mxu0 0.0
    %301 = vmatprep.subr.mxu0 0.0
    %302 = vmatpush2.msra.mxu0 0.0
    %303 = vmatprep.subr.mxu0 0.0
    %304 = vmatpush2.msra.mxu0 0.0
    %305 = vmatprep.subr.mxu0 0.0
    %306 = vmatpush2.msra.mxu0 0.0
    %307 = vmatprep.subr.mxu0 0.0
    %308 = vmatpush2.msra.mxu0 0.0
    %309 = vmatprep.subr.mxu0 0.0
    %310 = vmatpush2.msra.mxu0 0.0
    %311 = vmatprep.subr.mxu0 0.0
    %312 = vmatpush2.msra.mxu0 0.0
    %313 = vmatprep.subr.mxu0 0.0
    %314 = vmatpush2.msra.mxu0 0.0
    %315 = vmatprep.subr.mxu0 0.0
    %316 = vmatpush2.msra.mxu0 0.0
    %317 = vmatprep.subr.mxu0 0.0
    %318 = vmatpush2.msra.mxu0 0.0
    %319 = vmatprep.subr.mxu0 0.0
    %320 = vmatpush2.msra.mxu0 0.0
    %321 = vmatprep.subr.mxu0 0.0
    %322 = vmatpush2.msra.mxu0 0.0
    %323 = vmatprep.subr.mxu0 0.0
    %324 = vmatpush2.msra.mxu0 0.0
    %325 = vmatprep.subr.mxu0 0.0
    %326 = vmatpush2.msra.mxu0 0.0
    %327 = vmatprep.subr.mxu0 0.0
    %328 = vmatpush2.msra.mxu0 0.0
    %329 = vmatprep.subr.mxu0 0.0
    %330 = vmatpush2.msra.mxu0 0.0
    %331 = vmatprep.mubr.f32.mxu0 0.0
    %332 = vmatmul.mubr.f32.gmra.mxu0 %v243
    %v333 = vpop.f32.mrf.mxu0
    %v334 = vadd.f32 %v265, %v333
    %v335 = vpop.f32.mrf.mxu0
    %336 = vdwg.mxu0
    %v337 = vlaneseq
    %v338 = vand.u32 %v337, 127
    %vm339 = vcmp.ge.s32.totalorder %v338, 1
    %vm340 = vcmp.le.s32.totalorder %v338, 2
    %vm341 = vmand %vm339, %vm340
    %v342 = vsel %vm341, %v334, -1e+30
    %343 = vmax.xlane.f32.xlu0 %v342
    %v344 = vpop.xlane.xlu0 %343
    %v345 = vsub.f32 %v342, %v344
    %v346 = vmul.f32 %v345, 1.442695
    %v347 = vpow.pop %v346
    %348 = vadd.xlane.f32.xlu0 %v347
    %v349 = vpop.xlane.xlu0 %348
    %v350 = vrcp.pop %v349
    %v351 = vmul.f32 %v349, %v350
    %v352 = vsub.f32 2.0, %v351
    %v353 = vmul.f32 %v350, %v352
    %v354 = vmul.f32 %v347, %v353
    %vm355 = vcmp.eq.s32.totalorder %v338, 0
    %v356 = vsel %vm355, %v334, %v354
    %357 = vst [vmem:[%s7] sm:$0xff] %v356
    // Predicated region
    $region38: #{actor_critic_forward.1} parent=1 // pred_check
      _
    $region39: #{actor_critic_forward.1} parent=1 // pred_check_branch
      %359 = sbr.rel (0) target = $region41
    $region40: #{actor_critic_forward.1} parent=1 // pred_region
      _
    $region41: #{actor_critic_forward.1} parent=1 // pred_fallthru
      _
    // Predicated region
    $region42: #{actor_critic_forward.1} parent=1 // pred_check
      _
    $region43: #{actor_critic_forward.1} parent=1 // pred_check_branch
      %361 = sbr.rel (0) target = $region45
    $region44: #{actor_critic_forward.1} parent=1 // pred_region
      _
    $region45: #{actor_critic_forward.1} parent=1 // pred_fallthru
      _
    %362 = vsyncpa [#allocation3], 1
    %363 = vsyncpa [#allocation5], 1

</llo_original>
